<compile_context>
chip_gen: v5e
topology: v5e:2x2
jax: 0.10.0
libtpu: 0.0.40
codegen_flags: <defaults>
</compile_context>

<pallas_src>
import jax
import jax.numpy as jnp
from jax.experimental import pallas as pl
from jax.experimental.pallas import tpu as pltpu

_MiB = 1024 * 1024


def _round_up(x: int, n: int) -> int:
    return ((x + n - 1) // n) * n


def _largest_aligned_divisor(total: int, cap: int, align: int = 128) -> int:
    """Largest d <= cap with d % align == 0 and total % d == 0.

    `total` must be a positive multiple of `align`; falls back to `align`.
    """
    cap = max(cap, align)
    for i in range(1, total // align + 1):
        if total % i == 0:
            d = total // i
            if d <= cap and d % align == 0:
                return d
    return align


def _chip_config():
    """Per-generation tile caps / VMEM budgets."""
    kind = ""
    try:
        kind = jax.devices()[0].device_kind.lower()
    except Exception:  # pragma: no cover - defensive
        pass
    if "v7" in kind:
        # 64 MiB VMEM/TC, ~3.2 TB/s HBM: ~512-1024 class tiles reach the ridge.
        return dict(tm_cap=512, tn_cap=1024, tk_cap=1024,
                    tile_budget=40 * _MiB, vmem_limit=48 * _MiB)
    if "v6" in kind:
        # Worst compute:HBM ratio -> maximize output-tile reuse.
        return dict(tm_cap=1024, tn_cap=2048, tk_cap=2048,
                    tile_budget=80 * _MiB, vmem_limit=96 * _MiB)
    if "v5" in kind:
        # Prefer few/zero K steps (single vector-store slot on v5e).
        return dict(tm_cap=512, tn_cap=1024, tk_cap=1024,
                    tile_budget=48 * _MiB, vmem_limit=64 * _MiB)
    # Unknown chip: stay within the default scoped-VMEM limit.
    return dict(tm_cap=512, tn_cap=1024, tk_cap=512,
                tile_budget=20 * _MiB, vmem_limit=None)


def _vmem_bytes(tm, tn, tk, in_elt, out_elt, b_elt):
    """Approximate pipelined VMEM footprint of one grid step."""
    return (2 * tm * tk * in_elt      # x, double-buffered
            + 2 * tk * tn * in_elt    # W, double-buffered
            + 2 * tn * b_elt          # bias, double-buffered
            + tm * tn * 4             # f32 accumulator scratch
            + 2 * tm * tn * out_elt)  # output, double-buffered


# ---------------------------------------------------------------------------
# Kernels
# ---------------------------------------------------------------------------

def _conv1d_kernel_acc(x_ref, w_ref, b_ref, o_ref, acc_ref):
    # Multi K-step path: f32 accumulator, bias add + cast in finalize only.
    k = pl.program_id(2)

    @pl.when(k == 0)
    def _():
        acc_ref[...] = jnp.zeros_like(acc_ref)

    acc_ref[...] += jnp.dot(
        x_ref[...], w_ref[...], preferred_element_type=jnp.float32
    )

    @pl.when(k == pl.num_programs(2) - 1)
    def _():
        out = acc_ref[...] + b_ref[...].astype(jnp.float32)
        o_ref[...] = out.astype(o_ref.dtype)


def _conv1d_kernel_single_k(x_ref, w_ref, b_ref, o_ref):
    # Whole K slab in VMEM: no accumulator round-trip at all.
    out = jnp.dot(x_ref[...], w_ref[...], preferred_element_type=jnp.float32)
    o_ref[...] = (out + b_ref[...].astype(jnp.float32)).astype(o_ref.dtype)


# ---------------------------------------------------------------------------
# Wrapper
# ---------------------------------------------------------------------------

def conv1d(x, weight, bias, *, compute_dtype=None, out_dtype=None,
           tm=None, tn=None, tk=None):
    """GPT-2 Conv1D forward: y = x @ weight + bias.

    x: (..., nx), weight: (nx, nf), bias: (nf,)  ->  y: (..., nf)

    compute_dtype: optional cast for x/weight (e.g. jnp.bfloat16) -- MXU
      accumulation stays f32 via preferred_element_type.
    tm/tn/tk: optional tile-size caps (defaults are chip-tuned).
    """
    nx, nf = weight.shape
    orig_shape = x.shape
    assert orig_shape[-1] == nx

    if out_dtype is None:
        out_dtype = x.dtype
    x2d = x.reshape(-1, nx)
    m = x2d.shape[0]

    if compute_dtype is not None:
        x2d = x2d.astype(compute_dtype)
        weight = weight.astype(compute_dtype)
    in_elt = jnp.dtype(x2d.dtype).itemsize
    out_elt = jnp.dtype(out_dtype).itemsize
    b_elt = jnp.dtype(bias.dtype).itemsize

    cfg = _chip_config()
    tm_cap = tm if tm is not None else cfg["tm_cap"]
    tn_cap = tn if tn is not None else cfg["tn_cap"]
    tk_cap = tk if tk is not None else cfg["tk_cap"]

    # Aligned problem sizes.  K / N are padded at most to the next multiple of
    # 128 (zero padding along K is exact); never padded up to the tile size.
    k_al = _round_up(nx, 128)
    n_al = _round_up(nf, 128)

    # Sublane multiple for the second-to-last (row) dimension.
    sub = {4: 8, 2: 16, 1: 32}.get(in_elt, 8)

    # tk / tn divide the 128-aligned K / N exactly -> no extra padding traffic.
    tk = _largest_aligned_divisor(k_al, tk_cap)
    tn = _largest_aligned_divisor(n_al, tn_cap)
    tm = _round_up(min(tm_cap, _round_up(m, sub)), sub)

    # Megacore: with a single M block (decode shapes), make sure the N axis
    # has >= 2 parallel blocks so both TensorCores (v7x) get work.
    if pl.cdiv(m, tm) == 1 and n_al // tn < 2 and n_al >= 2 * 128:
        tn = _largest_aligned_divisor(n_al, n_al // 2)

    # Shrink tiles until the double-buffered footprint fits the VMEM budget.
    budget = cfg["tile_budget"]
    while _vmem_bytes(tm, tn, tk, in_elt, out_elt, b_elt) > budget:
        if tk > 128 and tk >= tn and tk >= tm:
            tk = _largest_aligned_divisor(k_al, tk // 2)
        elif tn > 128 and tn >= tm:
            tn = _largest_aligned_divisor(n_al, tn // 2)
        elif tm > sub:
            tm = max(sub, _round_up(tm // 2, sub))
        elif tk > 128:
            tk = _largest_aligned_divisor(k_al, tk // 2)
        elif tn > 128:
            tn = _largest_aligned_divisor(n_al, tn // 2)
        else:
            break

    m_p = _round_up(m, tm)
    m_blocks = m_p // tm
    n_blocks = n_al // tn
    k_steps = k_al // tk

    # Pad only when needed (GPT-2 dims are 128-aligned -> no weight copy).
    # TODO(synk): weight/bias padding for non-128-aligned dims should be
    # hoisted to parameter-load time in a real model loop.
    x_p = x2d
    if (m_p, k_al) != (m, nx):
        x_p = jnp.pad(x2d, ((0, m_p - m), (0, k_al - nx)))
    w_p = weight
    if (k_al, n_al) != (nx, nf):
        w_p = jnp.pad(weight, ((0, k_al - nx), (0, n_al - nf)))
    b_p = bias if n_al == nf else jnp.pad(bias, (0, n_al - nf))
    b2d = b_p.reshape(1, n_al)

    # Accurate streamed-traffic estimate: x read once per N block, W once per
    # M block, plus bias and output writeback.
    cost = pl.CostEstimate(
        flops=2 * m_p * k_al * n_al,
        transcendentals=0,
        bytes_accessed=(m_p * k_al * in_elt * n_blocks
                        + k_al * n_al * in_elt * m_blocks
                        + n_al * b_elt * m_blocks
                        + m_p * n_al * out_elt),
    )

    cp_kwargs = {}
    if cfg["vmem_limit"] is not None:
        cp_kwargs["vmem_limit_bytes"] = cfg["vmem_limit"]

    if k_steps == 1:
        out = pl.pallas_call(
            _conv1d_kernel_single_k,
            out_shape=jax.ShapeDtypeStruct((m_p, n_al), out_dtype),
            grid_spec=pltpu.PrefetchScalarGridSpec(
                num_scalar_prefetch=0,
                grid=(m_blocks, n_blocks),
                in_specs=[
                    pl.BlockSpec((tm, k_al), lambda i, j: (i, 0)),   # x
                    pl.BlockSpec((k_al, tn), lambda i, j: (0, j)),   # W
                    pl.BlockSpec((1, tn), lambda i, j: (0, j)),      # bias
                ],
                out_specs=pl.BlockSpec((tm, tn), lambda i, j: (i, j)),
            ),
            compiler_params=pltpu.CompilerParams(
                dimension_semantics=("parallel", "parallel"), **cp_kwargs),
            cost_estimate=cost,
        )(x_p, w_p, b2d)
    else:
        out = pl.pallas_call(
            _conv1d_kernel_acc,
            out_shape=jax.ShapeDtypeStruct((m_p, n_al), out_dtype),
            grid_spec=pltpu.PrefetchScalarGridSpec(
                num_scalar_prefetch=0,
                grid=(m_blocks, n_blocks, k_steps),
                in_specs=[
                    pl.BlockSpec((tm, tk), lambda i, j, k: (i, k)),   # x
                    pl.BlockSpec((tk, tn), lambda i, j, k: (k, j)),   # W
                    pl.BlockSpec((1, tn), lambda i, j, k: (0, j)),    # bias
                ],
                out_specs=pl.BlockSpec((tm, tn), lambda i, j, k: (i, j)),
                scratch_shapes=[pltpu.VMEM((tm, tn), jnp.float32)],
            ),
            compiler_params=pltpu.CompilerParams(
                dimension_semantics=("parallel", "parallel", "arbitrary"),
                **cp_kwargs),
            cost_estimate=cost,
        )(x_p, w_p, b2d)

    if (m_p, n_al) != (m, nf):
        out = out[:m, :nf]
    return out.reshape(orig_shape[:-1] + (nf,))


if __name__ == "__main__":
    # Small shapes consistent with the module's forward:
    # (batch, seq, nx) -> (batch, seq, nf)
    batch, seq, nx, nf = 2, 8, 32, 64

    key = jax.random.PRNGKey(0)
    kx, kw = jax.random.split(key)

    x = jax.random.normal(kx, (batch, seq, nx), dtype=jnp.float32)
    # nn.init.normal_(weight, std=0.02); bias initialized to zeros.
    weight = 0.02 * jax.random.normal(kw, (nx, nf), dtype=jnp.float32)
    bias = jnp.zeros((nf,), dtype=jnp.float32)

    y = conv1d(x, weight, bias)
    jax.block_until_ready(y)

    y_ref = (x.reshape(-1, nx) @ weight + bias).reshape(batch, seq, nf)
    assert y.shape == (batch, seq, nf)
    assert jnp.allclose(y, y_ref, atol=1e-5, rtol=1e-5)

    # Multi-block configuration (grid > 1 on M/N and multiple K steps) to
    # exercise the accumulator / finalize path.
    m2, nx2, nf2 = 48, 256, 384
    x2 = jax.random.normal(jax.random.PRNGKey(1), (m2, nx2), dtype=jnp.float32)
    w2 = 0.02 * jax.random.normal(jax.random.PRNGKey(2), (nx2, nf2),
                                  dtype=jnp.float32)
    b2 = jax.random.normal(jax.random.PRNGKey(3), (nf2,), dtype=jnp.float32)
    y2 = conv1d(x2, w2, b2, tm=16, tn=128, tk=128)
    jax.block_until_ready(y2)
    assert jnp.allclose(y2, x2 @ w2 + b2, atol=1e-4, rtol=1e-4)

    # bf16 fast path (f32 accumulation) -> looser tolerance.
    y3 = conv1d(x2, w2, b2, compute_dtype=jnp.bfloat16)
    jax.block_until_ready(y3)
    assert jnp.allclose(y3, x2 @ w2 + b2, atol=5e-2, rtol=5e-2)

    print("KERNEL_OK")
</pallas_src>

<mosaic_0001>
module attributes {stable_mosaic.version = 11 : i64} {
  func.func @_conv1d_kernel_single_k(%arg0: i32, %arg1: i32, %arg2: memref<16x128xf32, #tpu.memory_space<vmem>>, %arg3: memref<128x128xf32, #tpu.memory_space<vmem>>, %arg4: memref<1x128xf32, #tpu.memory_space<vmem>>, %arg5: memref<16x128xf32, #tpu.memory_space<vmem>>) attributes {dimension_semantics = [#tpu.dimension_semantics<parallel>, #tpu.dimension_semantics<parallel>], iteration_bounds = array<i64: 1, 1>, scalar_prefetch = 0 : i64, scratch_operands = 0 : i64, tpu.core_type = #tpu.core_type<tc>, window_params = [{transform_indices = @transform_0, window_bounds = array<i64: 16, 128>}, {transform_indices = @transform_1, window_bounds = array<i64: 128, 128>}, {transform_indices = @transform_2, window_bounds = array<i64: 1, 128>}, {transform_indices = @transform_3, window_bounds = array<i64: 16, 128>}]} {
    %c0 = arith.constant 0 : index
    %c0_0 = arith.constant 0 : index
    %0 = vector.load %arg2[%c0, %c0_0] : memref<16x128xf32, #tpu.memory_space<vmem>>, vector<16x128xf32>
    %c0_1 = arith.constant 0 : index
    %c0_2 = arith.constant 0 : index
    %1 = vector.load %arg3[%c0_1, %c0_2] : memref<128x128xf32, #tpu.memory_space<vmem>>, vector<128x128xf32>
    %cst = arith.constant dense<0.000000e+00> : vector<16x128xf32>
    %2 = tpu.matmul %0, %1, %cst {dimension_numbers = #tpu.dot_dimension_numbers<[1], [0], [0], [1], [0, 0, 1, 1], [], []>} : vector<16x128xf32>, vector<128x128xf32>, vector<16x128xf32> -> vector<16x128xf32>
    %c0_3 = arith.constant 0 : index
    %c0_4 = arith.constant 0 : index
    %3 = vector.load %arg4[%c0_3, %c0_4] : memref<1x128xf32, #tpu.memory_space<vmem>>, vector<1x128xf32>
    %4 = vector.broadcast %3 : vector<1x128xf32> to vector<16x128xf32>
    %5 = arith.addf %2, %4 : vector<16x128xf32>
    %c0_5 = arith.constant 0 : index
    %c0_6 = arith.constant 0 : index
    %6 = vector.load %arg5[%c0_5, %c0_6] : memref<16x128xf32, #tpu.memory_space<vmem>>, vector<16x128xf32>
    tpu.vector_store %arg5[%c0_5, %c0_6], %5 {strides = array<i32>} : memref<16x128xf32, #tpu.memory_space<vmem>>, vector<16x128xf32>,
    return
  }
  func.func @transform_0(%arg0: i32, %arg1: i32) -> (i32, i32) {
    %c0_i32 = arith.constant 0 : i32
    %c0_i32_0 = arith.constant 0 : i32
    return %arg0, %c0_i32 : i32, i32
  }
  func.func @transform_1(%arg0: i32, %arg1: i32) -> (i32, i32) {
    %c0_i32 = arith.constant 0 : i32
    %c0_i32_0 = arith.constant 0 : i32
    return %c0_i32, %arg1 : i32, i32
  }
  func.func @transform_2(%arg0: i32, %arg1: i32) -> (i32, i32) {
    %c0_i32 = arith.constant 0 : i32
    %c0_i32_0 = arith.constant 0 : i32
    return %c0_i32, %arg1 : i32, i32
  }
  func.func @transform_3(%arg0: i32, %arg1: i32) -> (i32, i32) {
    %c0_i32 = arith.constant 0 : i32
    return %arg0, %arg1 : i32, i32
  }
}

</mosaic_0001>

<llo_original>
// kernel: tpu_custom_call.1
$region0: #{tpu_custom_call.1}
  #allocation0 [shape = 'u32[]', space=smem, size = 0x4, offset = 0x4, fixed_abs, tag = 'smem constant byte address 0x4 - core index']
  #allocation1 [shape = 'u32[72,128]{1,0:T(1,128)}', space=vmem, size = 0x9000, scoped, tag = 'internal scratch']
  %s0 = inlined_call_operand.hbm [shape: f32[16,128], index: 0, kind: input, shape index: {}]
  %s1 = inlined_call_operand.hbm [shape: f32[128,128], index: 1, kind: input, shape index: {}]
  %s2 = inlined_call_operand.vmem [shape: f32[1,128], index: 2, kind: input, shape index: {}]
  %s3 = inlined_call_operand.hbm [shape: f32[16,128], index: 3, kind: output, shape index: {}]
  %s4 = sld [smem:[#allocation0]]
  $region30: #{tpu_custom_call.1} parent=0
    _
  %s6 = ssub.s32 1, %s4
  %s7 = scalar_select 0, %s6, %s4
  $region1: #{tpu_custom_call.1} parent=0
    #allocation2 [shape = 'u8[8192]{0}', space=vmem, size = 0x2000, scoped, tag = 'input window, operand 0, single buffered']
    #allocation3 [shape = 's32[1]{0}', space=sflag, size = 0x4, scoped, tag = 'scoped memory for tpu_custom_call.1']
    #allocation4 [shape = 's32[1]{0}', space=sflag, size = 0x4, scoped, tag = 'scoped memory for tpu_custom_call.1']
    #allocation5 [shape = 'u8[65536]{0}', space=vmem, size = 0x10000, scoped, tag = 'input window, operand 1, single buffered']
    #allocation6 [shape = 's32[1]{0}', space=sflag, size = 0x4, scoped, tag = 'scoped memory for tpu_custom_call.1']
    #allocation7 [shape = 'u8[8192]{0}', space=vmem, size = 0x2000, scoped, tag = 'output window, operand 0, single buffered']
    %8 = vsyncpa [#allocation3], 0
    %9 = vsyncpa [#allocation6], 0
    %10 = vsyncpa [#allocation4], 0
    // Predicated region
    $region2: #{tpu_custom_call.1} parent=1 // pred_check
      _
    $region3: #{tpu_custom_call.1} parent=1 // pred_check_branch
      %12 = sbr.rel (0) target = $region5
    $region4: #{tpu_custom_call.1} parent=1 // pred_region
      %14 = vsyncadd [#allocation3], 0
      %s15 = sshll.u32 %s0, 4
      %s16 = int_to_ptr.hbm [resolvable:$true] %s15
      %s17 = sshll.u32 [#allocation2], 4
      %s18 = int_to_ptr.vmem [resolvable:$true] %s17
      %23 = dma.hbm_to_vmem [thread:$0]  %s16, 256, %s18, [#allocation3], 128, 128, 8
    $region5: #{tpu_custom_call.1} parent=1 // pred_fallthru
      _
    // Predicated region
    $region6: #{tpu_custom_call.1} parent=1 // pred_check
      _
    $region7: #{tpu_custom_call.1} parent=1 // pred_check_branch
      %25 = sbr.rel (0) target = $region9
    $region8: #{tpu_custom_call.1} parent=1 // pred_region
      %27 = vsyncadd [#allocation6], 0
      %s28 = sshll.u32 %s1, 4
      %s29 = int_to_ptr.hbm [resolvable:$true] %s28
      %s30 = sshll.u32 [#allocation5], 4
      %s31 = int_to_ptr.vmem [resolvable:$true] %s30
      %36 = dma.hbm_to_vmem [thread:$0]  %s29, 2048, %s31, [#allocation6], 128, 128, 8
    $region9: #{tpu_custom_call.1} parent=1 // pred_fallthru
      _
    // Predicated region
    $region10: #{tpu_custom_call.1} parent=1 // pred_check
      _
    $region11: #{tpu_custom_call.1} parent=1 // pred_check_branch
      %38 = sbr.rel (0) target = $region13
    $region12: #{tpu_custom_call.1} parent=1 // pred_region
      _
    $region13: #{tpu_custom_call.1} parent=1 // pred_fallthru
      _
    // Predicated region
    $region14: #{tpu_custom_call.1} parent=1 // pred_check
      _
    $region15: #{tpu_custom_call.1} parent=1 // pred_check_branch
      %40 = sbr.rel (0) target = $region17
    $region16: #{tpu_custom_call.1} parent=1 // pred_region
      %42 = dma.done [#allocation3], 256
    $region17: #{tpu_custom_call.1} parent=1 // pred_fallthru
      _
    // Predicated region
    $region18: #{tpu_custom_call.1} parent=1 // pred_check
      _
    $region19: #{tpu_custom_call.1} parent=1 // pred_check_branch
      %44 = sbr.rel (0) target = $region21
    $region20: #{tpu_custom_call.1} parent=1 // pred_region
      %46 = dma.done [#allocation6], 2048
    $region21: #{tpu_custom_call.1} parent=1 // pred_fallthru
      _
    %v47 = vld [vmem:[#allocation2] sm:$0xff]
    %v48 = vld [vmem:[#allocation2 + $0x8] sm:$0xff]
    %v49 = vld [vmem:[#allocation5] sm:$0xff]
    %v50 = vld [vmem:[#allocation5 + $0x8] sm:$0xff]
    %v51 = vld [vmem:[#allocation5 + $0x10] sm:$0xff]
    %v52 = vld [vmem:[#allocation5 + $0x18] sm:$0xff]
    %v53 = vld [vmem:[#allocation5 + $0x20] sm:$0xff]
    %v54 = vld [vmem:[#allocation5 + $0x28] sm:$0xff]
    %v55 = vld [vmem:[#allocation5 + $0x30] sm:$0xff]
    %v56 = vld [vmem:[#allocation5 + $0x38] sm:$0xff]
    %v57 = vld [vmem:[#allocation5 + $0x40] sm:$0xff]
    %v58 = vld [vmem:[#allocation5 + $0x48] sm:$0xff]
    %v59 = vld [vmem:[#allocation5 + $0x50] sm:$0xff]
    %v60 = vld [vmem:[#allocation5 + $0x58] sm:$0xff]
    %v61 = vld [vmem:[#allocation5 + $0x60] sm:$0xff]
    %v62 = vld [vmem:[#allocation5 + $0x68] sm:$0xff]
    %v63 = vld [vmem:[#allocation5 + $0x70] sm:$0xff]
    %v64 = vld [vmem:[#allocation5 + $0x78] sm:$0xff]
    %v65 = vld [vmem:[%s2] sm:$0x1]
    %v67 = vperm.slane %v65, 0
    %69 = vmatpush.msra.mxu0 %v64
    %70 = vmatpush.msra.mxu0 %v63
    %71 = vmatpush.msra.mxu0 %v62
    %72 = vmatpush.msra.mxu0 %v61
    %73 = vmatpush.msra.mxu0 %v60
    %74 = vmatpush.msra.mxu0 %v59
    %75 = vmatpush.msra.mxu0 %v58
    %76 = vmatpush.msra.mxu0 %v57
    %77 = vmatpush.msra.mxu0 %v56
    %78 = vmatpush.msra.mxu0 %v55
    %79 = vmatpush.msra.mxu0 %v54
    %80 = vmatpush.msra.mxu0 %v53
    %81 = vmatpush.msra.mxu0 %v52
    %82 = vmatpush.msra.mxu0 %v51
    %83 = vmatpush.msra.mxu0 %v50
    %84 = vmatpush.msra.mxu0 %v49
    %85 = vmatmul.f32.gmra.mxu0 %v47
    %v86 = vpop.f32.mrf.mxu0
    %v87 = vadd.f32 %v67, %v86
    %88 = vmatmul.f32.gmra.mxu0 %v48
    %v89 = vpop.f32.mrf.mxu0
    %v90 = vadd.f32 %v67, %v89
    %91 = vdwg.mxu0
    %92 = vst [vmem:[#allocation7] sm:$0xff] %v87
    %93 = vst [vmem:[#allocation7 + $0x8] sm:$0xff] %v90
    // Predicated region
    $region22: #{tpu_custom_call.1} parent=1 // pred_check
      _
    $region23: #{tpu_custom_call.1} parent=1 // pred_check_branch
      %95 = sbr.rel (0) target = $region25
    $region24: #{tpu_custom_call.1} parent=1 // pred_region
      %97 = vsyncadd [#allocation4], 0
      %s98 = sshll.u32 [#allocation7], 4
      %s99 = int_to_ptr.vmem [resolvable:$true] %s98
      %s100 = sshll.u32 %s3, 4
      %s101 = int_to_ptr.hbm [resolvable:$true] %s100
      %106 = dma.vmem_to_hbm [thread:$0]  %s99, 256, %s101, [#allocation4], 128, 128, 8
    $region25: #{tpu_custom_call.1} parent=1 // pred_fallthru
      _
    // Predicated region
    $region26: #{tpu_custom_call.1} parent=1 // pred_check
      _
    $region27: #{tpu_custom_call.1} parent=1 // pred_check_branch
      %108 = sbr.rel (0) target = $region29
    $region28: #{tpu_custom_call.1} parent=1 // pred_region
      %110 = dma.done [#allocation4], 256
    $region29: #{tpu_custom_call.1} parent=1 // pred_fallthru
      _
    %111 = vsyncpa [#allocation3], 1
    %112 = vsyncpa [#allocation6], 1
    %113 = vsyncpa [#allocation4], 1

</llo_original>
